<compile_context>
chip_gen: v7x
topology: tpu7x:2x2x1
jax: 0.10.0
libtpu: 0.0.40
codegen_flags: <defaults>
</compile_context>

<pallas_src>
import functools

import jax
import jax.numpy as jnp
import numpy as np
from jax.experimental import pallas as pl
from jax.experimental.pallas import tpu as pltpu


def _round_up(x, m):
    return ((x + m - 1) // m) * m


def _slab_layout(vocab, embed, hidden):
    """Row offsets of each operand inside the single packed (rows, 128) f32 slab.
    All offsets are multiples of 8 -> every slice is (8,128)-tile aligned."""
    r8 = lambda n: _round_up(n, 8)
    off_wh = 0                                # (H, 4H)   [W2^T | Whh_r^T | Whh_z^T | Whh_n^T]
    off_wih = off_wh + r8(hidden)             # (H+E, 3H) GRU input weights (ctx rows, then x rows)
    off_f1 = off_wih + r8(hidden + embed)     # (H, E)    fc1^T
    off_f2 = off_f1 + r8(hidden)              # (E, V)    fc2^T
    off_misc = off_f2 + r8(embed)             # (8, 128)  V.weight + packed biases
    off_emb = off_misc + 8                    # (V, E)    embedding table
    rows = off_emb + r8(vocab)
    return dict(wh=off_wh, wih=off_wih, f1=off_f1, f2=off_f2,
                misc=off_misc, emb=off_emb, rows=rows)


# ----------------------------------------------------------------------------
# Pallas kernel: one decoder step (attention + 1-layer GRU cell + fc head).
#
# Inputs:
#   x_tok_ref    : SMEM (B, 1) int32   token ids
#   hidden_ref   : VMEM (1, B, H) f32  previous hidden state (dec_layers == 1)
#   enc_keys_ref : VMEM (B, T, 2H) f32 [ enc_output | W1(enc_output)+b1 ]
#   slab_ref     : VMEM (rows, 128) f32  packed weights/biases/embedding
# Output:
#   out_ref      : VMEM (B, OUT_W) f32  packed [ logits(V) | h_new(H) | aw(T) | 0... ]
# ----------------------------------------------------------------------------
def decoder_step_kernel(x_tok_ref, hidden_ref, enc_keys_ref, slab_ref, out_ref,
                        *, vocab, embed, hidden, seqlen):
    H, E, V, T = hidden, embed, vocab, seqlen
    off = _slab_layout(V, E, H)

    h = hidden_ref[0]                          # (B, H)   (sum over layers == layer 0 for L=1)
    B = h.shape[0]
    enc_keys = enc_keys_ref[...]               # (B, T, 2H)
    enc = enc_keys[:, :, :H]                   # (B, T, H)
    s1 = enc_keys[:, :, H:]                    # (B, T, H)  precomputed W1(enc)+b1

    misc = slab_ref[off['misc']:off['misc'] + 8, :]   # (8, 128)
    vw = misc[0:1, :H]                          # V.weight
    b_h = misc[1:2, :4 * H]                     # [W2.b | b_hh]
    b_ih = misc[2:3, :]                         # b_ih zero-padded to 128 lanes
    b_f1 = misc[3:4, :E]
    b_f2 = misc[4:5, :V]

    # ---- embedding gather in-kernel (one-hot x MXU; replaces the XLA gather op) ----
    onehot_rows = []
    for b in range(B):
        t = x_tok_ref[b, 0]
        row = (jax.lax.broadcasted_iota(jnp.int32, (1, V), 1) == t)
        onehot_rows.append(row.astype(jnp.float32))
    onehot = jnp.concatenate(onehot_rows, axis=0)                       # (B, V)
    x = jnp.dot(onehot, slab_ref[off['emb']:off['emb'] + V, :],
                preferred_element_type=jnp.float32)[:, :E]              # (B, E)

    # ---- fused h-path: W2 + all three GRU hidden-gate matmuls in one MXU push ----
    hh = jnp.dot(h, slab_ref[off['wh']:off['wh'] + H, :],
                 preferred_element_type=jnp.float32)[:, :4 * H] + b_h   # (B, 4H)
    s2 = hh[:, 0 * H:1 * H]
    gh_r = hh[:, 1 * H:2 * H]
    gh_z = hh[:, 2 * H:3 * H]
    gh_n = hh[:, 3 * H:4 * H]

    # ---- Bahdanau attention (V.bias dropped: constant shift is softmax-invariant) ----
    score = jnp.tanh(s1 + s2[:, None, :])                               # (B, T, H)
    vsc = jnp.sum(score * vw[None], axis=-1)                            # (B, T)
    m = jnp.max(vsc, axis=1, keepdims=True)
    e = jnp.exp(vsc - m)
    denom = jnp.sum(e, axis=1, keepdims=True)
    aw = e * pl.reciprocal(denom, approx=True)                          # softmax over time
    ctx = jnp.sum(aw[:, :, None] * enc, axis=1)                         # (B, H)

    # ---- GRU input path: lane-concat + ONE matmul against the zero-padded w_ih ----
    gru_in = jnp.concatenate([ctx, x], axis=-1)                         # (B, H+E)
    gi = jnp.dot(gru_in, slab_ref[off['wih']:off['wih'] + H + E, :],
                 preferred_element_type=jnp.float32) + b_ih             # (B, 128)

    # ---- GRU cell (PyTorch gate order r, z, n; b_hn inside the r * (...) term) ----
    r = jax.nn.sigmoid(gi[:, 0 * H:1 * H] + gh_r)
    z = jax.nn.sigmoid(gi[:, 1 * H:2 * H] + gh_z)
    n = jnp.tanh(gi[:, 2 * H:3 * H] + r * gh_n)
    h_new = (1.0 - z) * n + z * h                                       # (B, H)

    # ---- fc head: Linear -> LeakyReLU(0.01) -> Linear ----
    f1 = jnp.dot(h_new, slab_ref[off['f1']:off['f1'] + H, :],
                 preferred_element_type=jnp.float32)[:, :E] + b_f1
    f1 = jnp.where(f1 > 0, f1, 0.01 * f1)
    logits = jnp.dot(f1, slab_ref[off['f2']:off['f2'] + E, :],
                     preferred_element_type=jnp.float32)[:, :V] + b_f2

    # ---- single lane-dense packed store ----
    pieces = [logits, h_new, aw]
    pad = out_ref.shape[-1] - (V + H + T)
    if pad > 0:
        pieces.append(jnp.zeros((B, pad), jnp.float32))
    out_ref[...] = jnp.concatenate(pieces, axis=-1)


# ----------------------------------------------------------------------------
# Wrapper: one-time weight packing, per-sequence precompute, per-step call.
# ----------------------------------------------------------------------------
def prepare_decoder_weights(params):
    """One-time (per model) packing of every constant operand into a single slab."""
    H = params['w2_w'].shape[0]
    E = params['emb'].shape[1]
    V = params['fc2_w'].shape[0]
    assert 4 * H <= 128 and E <= 128 and V <= 128, \
        "single-slab packing assumes all lane widths <= 128 (H <= 32 here)"

    off = _slab_layout(V, E, H)
    slab = jnp.zeros((off['rows'], 128), jnp.float32)
    slab = slab.at[off['wh']:off['wh'] + H, :4 * H].set(
        jnp.concatenate([params['w2_w'].T, params['w_hh'].T], axis=1))
    slab = slab.at[off['wih']:off['wih'] + H + E, :3 * H].set(params['w_ih'].T)
    slab = slab.at[off['f1']:off['f1'] + H, :E].set(params['fc1_w'].T)
    slab = slab.at[off['f2']:off['f2'] + E, :V].set(params['fc2_w'].T)
    m = off['misc']
    slab = slab.at[m + 0, :H].set(params['v_w'][0])
    slab = slab.at[m + 1, :4 * H].set(
        jnp.concatenate([params['w2_b'][0], params['b_hh'][0]]))
    slab = slab.at[m + 2, :3 * H].set(params['b_ih'][0])
    slab = slab.at[m + 3, :E].set(params['fc1_b'][0])
    slab = slab.at[m + 4, :V].set(params['fc2_b'][0])
    slab = slab.at[off['emb']:off['emb'] + V, :E].set(params['emb'])

    return {'slab': slab,
            'w1_w': params['w1_w'], 'w1_b': params['w1_b'],   # used in the hoisted precompute
            'dims': (V, E, H)}


def precompute_attention_keys(prepared, enc_output):
    """[enc_output | W1(enc_output)+b1] — constant across decode steps, hoisted per sequence."""
    s1 = jnp.einsum('bth,oh->bto', enc_output, prepared['w1_w']) + prepared['w1_b']
    return jnp.concatenate([enc_output, s1], axis=-1)       # (B, T, 2H)


@functools.partial(jax.jit, static_argnames=('dims',))
def _decoder_step_jit(slab, x_tok, hidden, enc_keys, *, dims):
    V, E, H = dims
    B = x_tok.shape[0]
    T = enc_keys.shape[1]
    out_w = _round_up(V + H + T, 128)

    kernel = functools.partial(decoder_step_kernel,
                               vocab=V, embed=E, hidden=H, seqlen=T)
    vmem = pl.BlockSpec(memory_space=pltpu.MemorySpace.VMEM)
    smem = pl.BlockSpec(memory_space=pltpu.MemorySpace.SMEM)

    out = pl.pallas_call(
        kernel,
        out_shape=jax.ShapeDtypeStruct((B, out_w), jnp.float32),
        in_specs=[smem, vmem, vmem, vmem],
        out_specs=vmem,
    )(x_tok, hidden, enc_keys, slab)

    logits = out[:, :V]
    h_new = out[:, V:V + H]
    aw = out[:, V + H:V + H + T]
    # Match torch return conventions: output (B,V); hidden (1,B,H); aw (B,T,1)
    return logits, h_new[None, :, :], aw[:, :, None]


def decoder_step(prepared, x_tok, hidden, enc_keys):
    return _decoder_step_jit(prepared['slab'], x_tok, hidden, enc_keys,
                             dims=prepared['dims'])


def decoder_forward(params, x_tok, hidden, enc_output):
    """Single Decoder.forward() step. In a real decode loop, `prepared` is built
    once per model and `enc_keys` once per sequence; only decoder_step runs per token."""
    prepared = prepare_decoder_weights(params)
    enc_keys = precompute_attention_keys(prepared, enc_output)
    return decoder_step(prepared, x_tok, hidden, enc_keys)


# ----------------------------------------------------------------------------
# Pure-JAX reference (mirrors the torch forward) for a correctness check.
# ----------------------------------------------------------------------------
def decoder_reference(params, x_tok, hidden, enc_output):
    x_emb = params['emb'][x_tok[:, 0]]
    h = jnp.sum(hidden, axis=0)
    H = h.shape[-1]

    s1 = jnp.einsum('bth,oh->bto', enc_output, params['w1_w']) + params['w1_b']
    s2 = h @ params['w2_w'].T + params['w2_b']
    score = jnp.tanh(s1 + s2[:, None, :])
    vsc = jnp.sum(score * params['v_w'][None], axis=-1) + params['v_b']
    aw = jax.nn.softmax(vsc, axis=1)
    ctx = jnp.sum(aw[:, :, None] * enc_output, axis=1)
    gru_in = jnp.concatenate([ctx, x_emb], axis=-1)

    gi = gru_in @ params['w_ih'].T + params['b_ih']
    gh = h @ params['w_hh'].T + params['b_hh']
    r = jax.nn.sigmoid(gi[:, :H] + gh[:, :H])
    z = jax.nn.sigmoid(gi[:, H:2 * H] + gh[:, H:2 * H])
    n = jnp.tanh(gi[:, 2 * H:] + r * gh[:, 2 * H:])
    h_new = (1 - z) * n + z * h

    f1 = h_new @ params['fc1_w'].T + params['fc1_b']
    f1 = jnp.where(f1 > 0, f1, 0.01 * f1)
    logits = f1 @ params['fc2_w'].T + params['fc2_b']
    return logits, h_new[None], aw[:, :, None]


# ----------------------------------------------------------------------------
# Deterministic parameter construction + demo
# ----------------------------------------------------------------------------
def make_params(key, V, E, H):
    ks = jax.random.split(key, 16)
    f = lambda k, shape: (0.1 * jax.random.normal(k, shape)).astype(jnp.float32)
    return {
        'emb':   f(ks[0], (V, E)),
        'w1_w':  f(ks[1], (H, H)),  'w1_b': f(ks[2], (1, H)),
        'w2_w':  f(ks[3], (H, H)),  'w2_b': f(ks[4], (1, H)),
        'v_w':   f(ks[5], (1, H)),  'v_b':  f(ks[6], (1, 1)),
        'w_ih':  f(ks[7], (3 * H, H + E)),
        'w_hh':  f(ks[8], (3 * H, H)),
        'b_ih':  f(ks[9], (1, 3 * H)),
        'b_hh':  f(ks[10], (1, 3 * H)),
        'fc1_w': f(ks[11], (E, H)), 'fc1_b': f(ks[12], (1, E)),
        'fc2_w': f(ks[13], (V, E)), 'fc2_b': f(ks[14], (1, V)),
    }


if __name__ == "__main__":
    B, T = 2, 8           # batch, encoder length
    V, E, H = 32, 16, 32  # output_dim (vocab), embed_dim, hidden_dim

    key = jax.random.PRNGKey(0)
    kp, kx, kh, ke = jax.random.split(key, 4)

    params = make_params(kp, V, E, H)
    x_tok = jax.random.randint(kx, (B, 1), 0, V, dtype=jnp.int32)
    hidden = (0.1 * jax.random.normal(kh, (1, B, H))).astype(jnp.float32)
    enc_output = (0.1 * jax.random.normal(ke, (B, T, H))).astype(jnp.float32)

    logits, h_new, aw = decoder_forward(params, x_tok, hidden, enc_output)
    jax.block_until_ready((logits, h_new, aw))

    ref_logits, ref_h, ref_aw = decoder_reference(params, x_tok, hidden, enc_output)
    assert logits.shape == (B, V) and h_new.shape == (1, B, H) and aw.shape == (B, T, 1)
    # Tolerance loosened vs. 1e-4 because the softmax denominator now uses the
    # EUP approximate reciprocal (pl.reciprocal(approx=True)).
    np.testing.assert_allclose(np.asarray(logits), np.asarray(ref_logits), atol=2e-3, rtol=2e-3)
    np.testing.assert_allclose(np.asarray(h_new), np.asarray(ref_h), atol=2e-3, rtol=2e-3)
    np.testing.assert_allclose(np.asarray(aw), np.asarray(ref_aw), atol=2e-3, rtol=2e-3)

    print("KERNEL_OK")
</pallas_src>

<mosaic_0001>
module attributes {stable_mosaic.version = 11 : i64} {
  func.func @decoder_step_kernel(%arg0: memref<2x1xi32, #tpu.memory_space<smem>>, %arg1: memref<1x2x32xf32, #tpu.memory_space<vmem>>, %arg2: memref<2x8x64xf32, #tpu.memory_space<vmem>>, %arg3: memref<168x128xf32, #tpu.memory_space<vmem>>, %arg4: memref<2x128xf32, #tpu.memory_space<vmem>>) attributes {dimension_semantics = [], scalar_prefetch = 0 : i64, scratch_operands = 0 : i64, tpu.core_type = #tpu.core_type<tc>} {
    %c0 = arith.constant 0 : index
    %c0_0 = arith.constant 0 : index
    %c0_1 = arith.constant 0 : index
    %0 = vector.load %arg1[%c0, %c0_0, %c0_1] : memref<1x2x32xf32, #tpu.memory_space<vmem>>, vector<1x2x32xf32>
    %1 = vector.shape_cast %0 : vector<1x2x32xf32> to vector<2x32xf32>
    %c0_2 = arith.constant 0 : index
    %c0_3 = arith.constant 0 : index
    %c0_4 = arith.constant 0 : index
    %2 = vector.load %arg2[%c0_2, %c0_3, %c0_4] : memref<2x8x64xf32, #tpu.memory_space<vmem>>, vector<2x8x64xf32>
    %3 = vector.extract_strided_slice %2 {offsets = [0, 0, 0], sizes = [2, 8, 32], strides = [1, 1, 1]} : vector<2x8x64xf32> to vector<2x8x32xf32>
    %4 = vector.extract_strided_slice %2 {offsets = [0, 0, 32], sizes = [2, 8, 32], strides = [1, 1, 1]} : vector<2x8x64xf32> to vector<2x8x32xf32>
    %c128 = arith.constant 128 : index
    %c0_5 = arith.constant 0 : index
    %5 = vector.load %arg3[%c128, %c0_5] : memref<168x128xf32, #tpu.memory_space<vmem>>, vector<8x128xf32>
    %6 = vector.extract_strided_slice %5 {offsets = [0, 0], sizes = [1, 32], strides = [1, 1]} : vector<8x128xf32> to vector<1x32xf32>
    %7 = vector.extract_strided_slice %5 {offsets = [1, 0], sizes = [1, 128], strides = [1, 1]} : vector<8x128xf32> to vector<1x128xf32>
    %8 = vector.extract_strided_slice %5 {offsets = [2, 0], sizes = [1, 128], strides = [1, 1]} : vector<8x128xf32> to vector<1x128xf32>
    %9 = vector.extract_strided_slice %5 {offsets = [3, 0], sizes = [1, 16], strides = [1, 1]} : vector<8x128xf32> to vector<1x16xf32>
    %10 = vector.extract_strided_slice %5 {offsets = [4, 0], sizes = [1, 32], strides = [1, 1]} : vector<8x128xf32> to vector<1x32xf32>
    %c0_6 = arith.constant 0 : index
    %c0_7 = arith.constant 0 : index
    %11 = memref.load %arg0[%c0_6, %c0_7] : memref<2x1xi32, #tpu.memory_space<smem>>
    %12 = tpu.iota {dimensions = array<i32: 1>} : vector<1x32xi32>
    %13 = vector.broadcast %11 : i32 to vector<1x32xi32>
    %14 = arith.cmpi eq, %12, %13 : vector<1x32xi32>
    %15 = arith.extui %14 : vector<1x32xi1> to vector<1x32xi32>
    %16 = arith.sitofp %15 : vector<1x32xi32> to vector<1x32xf32>
    %c1 = arith.constant 1 : index
    %c0_8 = arith.constant 0 : index
    %17 = memref.load %arg0[%c1, %c0_8] : memref<2x1xi32, #tpu.memory_space<smem>>
    %18 = tpu.iota {dimensions = array<i32: 1>} : vector<1x32xi32>
    %19 = vector.broadcast %17 : i32 to vector<1x32xi32>
    %20 = arith.cmpi eq, %18, %19 : vector<1x32xi32>
    %21 = arith.extui %20 : vector<1x32xi1> to vector<1x32xi32>
    %22 = arith.sitofp %21 : vector<1x32xi32> to vector<1x32xf32>
    %23 = tpu.concatenate %16, %22 in 0 : vector<1x32xf32>, vector<1x32xf32> -> vector<2x32xf32>
    %c136 = arith.constant 136 : index
    %c0_9 = arith.constant 0 : index
    %24 = vector.load %arg3[%c136, %c0_9] : memref<168x128xf32, #tpu.memory_space<vmem>>, vector<32x128xf32>
    %cst = arith.constant dense<0.000000e+00> : vector<2x128xf32>
    %25 = tpu.matmul %23, %24, %cst {dimension_numbers = #tpu.dot_dimension_numbers<[1], [0], [0], [1], [0, 0, 1, 1], [], []>} : vector<2x32xf32>, vector<32x128xf32>, vector<2x128xf32> -> vector<2x128xf32>
    %26 = vector.extract_strided_slice %25 {offsets = [0, 0], sizes = [2, 16], strides = [1, 1]} : vector<2x128xf32> to vector<2x16xf32>
    %c0_10 = arith.constant 0 : index
    %c0_11 = arith.constant 0 : index
    %27 = vector.load %arg3[%c0_10, %c0_11] : memref<168x128xf32, #tpu.memory_space<vmem>>, vector<32x128xf32>
    %cst_12 = arith.constant dense<0.000000e+00> : vector<2x128xf32>
    %28 = tpu.matmul %1, %27, %cst_12 {dimension_numbers = #tpu.dot_dimension_numbers<[1], [0], [0], [1], [0, 0, 1, 1], [], []>} : vector<2x32xf32>, vector<32x128xf32>, vector<2x128xf32> -> vector<2x128xf32>
    %29 = vector.broadcast %7 : vector<1x128xf32> to vector<2x128xf32>
    %30 = arith.addf %28, %29 : vector<2x128xf32>
    %31 = vector.extract_strided_slice %30 {offsets = [0, 0], sizes = [2, 32], strides = [1, 1]} : vector<2x128xf32> to vector<2x32xf32>
    %32 = vector.extract_strided_slice %30 {offsets = [0, 32], sizes = [2, 32], strides = [1, 1]} : vector<2x128xf32> to vector<2x32xf32>
    %33 = vector.extract_strided_slice %30 {offsets = [0, 64], sizes = [2, 32], strides = [1, 1]} : vector<2x128xf32> to vector<2x32xf32>
    %34 = vector.extract_strided_slice %30 {offsets = [0, 96], sizes = [2, 32], strides = [1, 1]} : vector<2x128xf32> to vector<2x32xf32>
    %35 = vector.shape_cast %31 : vector<2x32xf32> to vector<2x1x32xf32>
    %36 = vector.broadcast %35 : vector<2x1x32xf32> to vector<2x8x32xf32>
    %37 = arith.addf %4, %36 : vector<2x8x32xf32>
    %38 = math.tanh %37 : vector<2x8x32xf32>
    %39 = vector.shape_cast %6 : vector<1x32xf32> to vector<1x1x32xf32>
    %40 = vector.broadcast %39 : vector<1x1x32xf32> to vector<2x8x32xf32>
    %41 = arith.mulf %38, %40 : vector<2x8x32xf32>
    %cst_13 = arith.constant dense<0.000000e+00> : vector<2x8xf32>
    %42 = vector.multi_reduction <add>, %41, %cst_13 [2] : vector<2x8x32xf32> to vector<2x8xf32>
    %cst_14 = arith.constant dense<0xFF800000> : vector<2xf32>
    %43 = vector.multi_reduction <maximumf>, %42, %cst_14 [1] : vector<2x8xf32> to vector<2xf32>
    %44 = vector.shape_cast %43 : vector<2xf32> to vector<2x1xf32>
    %45 = vector.broadcast %44 : vector<2x1xf32> to vector<2x8xf32>
    %46 = arith.subf %42, %45 : vector<2x8xf32>
    %47 = math.exp %46 : vector<2x8xf32>
    %cst_15 = arith.constant dense<0.000000e+00> : vector<2xf32>
    %48 = vector.multi_reduction <add>, %47, %cst_15 [1] : vector<2x8xf32> to vector<2xf32>
    %49 = vector.shape_cast %48 : vector<2xf32> to vector<2x1xf32>
    %50 = tpu.reciprocal %49 {approx = true} : vector<2x1xf32> -> vector<2x1xf32>
    %51 = vector.broadcast %50 : vector<2x1xf32> to vector<2x8xf32>
    %52 = arith.mulf %47, %51 : vector<2x8xf32>
    %53 = vector.shape_cast %52 : vector<2x8xf32> to vector<2x8x1xf32>
    %54 = vector.broadcast %53 : vector<2x8x1xf32> to vector<2x8x32xf32>
    %55 = arith.mulf %54, %3 : vector<2x8x32xf32>
    %cst_16 = arith.constant dense<0.000000e+00> : vector<2x32xf32>
    %56 = vector.multi_reduction <add>, %55, %cst_16 [1] : vector<2x8x32xf32> to vector<2x32xf32>
    %57 = tpu.concatenate %56, %26 in 1 : vector<2x32xf32>, vector<2x16xf32> -> vector<2x48xf32>
    %c32 = arith.constant 32 : index
    %c0_17 = arith.constant 0 : index
    %58 = vector.load %arg3[%c32, %c0_17] : memref<168x128xf32, #tpu.memory_space<vmem>>, vector<48x128xf32>
    %cst_18 = arith.constant dense<0.000000e+00> : vector<2x128xf32>
    %59 = tpu.matmul %57, %58, %cst_18 {dimension_numbers = #tpu.dot_dimension_numbers<[1], [0], [0], [1], [0, 0, 1, 1], [], []>} : vector<2x48xf32>, vector<48x128xf32>, vector<2x128xf32> -> vector<2x128xf32>
    %60 = vector.broadcast %8 : vector<1x128xf32> to vector<2x128xf32>
    %61 = arith.addf %59, %60 : vector<2x128xf32>
    %62 = vector.extract_strided_slice %61 {offsets = [0, 0], sizes = [2, 32], strides = [1, 1]} : vector<2x128xf32> to vector<2x32xf32>
    %63 = arith.addf %62, %32 : vector<2x32xf32>
    %64 = arith.negf %63 : vector<2x32xf32>
    %65 = math.exp %64 : vector<2x32xf32>
    %cst_19 = arith.constant 1.000000e+00 : f32
    %66 = vector.broadcast %cst_19 : f32 to vector<2x32xf32>
    %67 = arith.addf %66, %65 : vector<2x32xf32>
    %68 = arith.divf %66, %67 : vector<2x32xf32>
    %69 = vector.extract_strided_slice %61 {offsets = [0, 32], sizes = [2, 32], strides = [1, 1]} : vector<2x128xf32> to vector<2x32xf32>
    %70 = arith.addf %69, %33 : vector<2x32xf32>
    %71 = arith.negf %70 : vector<2x32xf32>
    %72 = math.exp %71 : vector<2x32xf32>
    %cst_20 = arith.constant 1.000000e+00 : f32
    %73 = vector.broadcast %cst_20 : f32 to vector<2x32xf32>
    %74 = arith.addf %73, %72 : vector<2x32xf32>
    %75 = arith.divf %73, %74 : vector<2x32xf32>
    %76 = vector.extract_strided_slice %61 {offsets = [0, 64], sizes = [2, 32], strides = [1, 1]} : vector<2x128xf32> to vector<2x32xf32>
    %77 = arith.mulf %68, %34 : vector<2x32xf32>
    %78 = arith.addf %76, %77 : vector<2x32xf32>
    %79 = math.tanh %78 : vector<2x32xf32>
    %cst_21 = arith.constant 1.000000e+00 : f32
    %80 = vector.broadcast %cst_21 : f32 to vector<2x32xf32>
    %81 = arith.subf %80, %75 : vector<2x32xf32>
    %82 = arith.mulf %81, %79 : vector<2x32xf32>
    %83 = arith.mulf %75, %1 : vector<2x32xf32>
    %84 = arith.addf %82, %83 : vector<2x32xf32>
    %c80 = arith.constant 80 : index
    %c0_22 = arith.constant 0 : index
    %85 = vector.load %arg3[%c80, %c0_22] : memref<168x128xf32, #tpu.memory_space<vmem>>, vector<32x128xf32>
    %cst_23 = arith.constant dense<0.000000e+00> : vector<2x128xf32>
    %86 = tpu.matmul %84, %85, %cst_23 {dimension_numbers = #tpu.dot_dimension_numbers<[1], [0], [0], [1], [0, 0, 1, 1], [], []>} : vector<2x32xf32>, vector<32x128xf32>, vector<2x128xf32> -> vector<2x128xf32>
    %87 = vector.extract_strided_slice %86 {offsets = [0, 0], sizes = [2, 16], strides = [1, 1]} : vector<2x128xf32> to vector<2x16xf32>
    %88 = vector.broadcast %9 : vector<1x16xf32> to vector<2x16xf32>
    %89 = arith.addf %87, %88 : vector<2x16xf32>
    %cst_24 = arith.constant 0.000000e+00 : f32
    %90 = vector.broadcast %cst_24 : f32 to vector<2x16xf32>
    %91 = arith.cmpf ogt, %89, %90 : vector<2x16xf32>
    %cst_25 = arith.constant 0.00999999977 : f32
    %92 = vector.broadcast %cst_25 : f32 to vector<2x16xf32>
    %93 = arith.mulf %92, %89 : vector<2x16xf32>
    %94 = arith.select %91, %89, %93 : vector<2x16xi1>, vector<2x16xf32>
    %c112 = arith.constant 112 : index
    %c0_26 = arith.constant 0 : index
    %95 = vector.load %arg3[%c112, %c0_26] : memref<168x128xf32, #tpu.memory_space<vmem>>, vector<16x128xf32>
    %cst_27 = arith.constant dense<0.000000e+00> : vector<2x128xf32>
    %96 = tpu.matmul %94, %95, %cst_27 {dimension_numbers = #tpu.dot_dimension_numbers<[1], [0], [0], [1], [0, 0, 1, 1], [], []>} : vector<2x16xf32>, vector<16x128xf32>, vector<2x128xf32> -> vector<2x128xf32>
    %97 = vector.extract_strided_slice %96 {offsets = [0, 0], sizes = [2, 32], strides = [1, 1]} : vector<2x128xf32> to vector<2x32xf32>
    %98 = vector.broadcast %10 : vector<1x32xf32> to vector<2x32xf32>
    %99 = arith.addf %97, %98 : vector<2x32xf32>
    %cst_28 = arith.constant 0.000000e+00 : f32
    %100 = vector.broadcast %cst_28 : f32 to vector<2x56xf32>
    %101 = tpu.concatenate %99, %84, %52, %100 in 1 : vector<2x32xf32>, vector<2x32xf32>, vector<2x8xf32>, vector<2x56xf32> -> vector<2x128xf32>
    %c0_29 = arith.constant 0 : index
    %c0_30 = arith.constant 0 : index
    %102 = vector.load %arg4[%c0_29, %c0_30] : memref<2x128xf32, #tpu.memory_space<vmem>>, vector<2x128xf32>
    tpu.vector_store %arg4[%c0_29, %c0_30], %101 {strides = array<i32>} : memref<2x128xf32, #tpu.memory_space<vmem>>, vector<2x128xf32>,
    return
  }
}

</mosaic_0001>

<llo_original>
// kernel: _decoder_step_jit.1
$region0: #{_decoder_step_jit.1}
  #allocation0 [shape = 'u32[]', space=smem, size = 0x4, offset = 0x4, fixed_abs, tag = 'smem constant byte address 0x4 - core index']
  #allocation1 [shape = 'u32[144,128]{1,0:T(1,128)}', space=vmem, size = 0x12000, scoped, tag = 'internal scratch']
  %s0 = inlined_call_operand.vmem [shape: s32[2,1], index: 0, kind: input, shape index: {}]
  %s1 = inlined_call_operand.vmem [shape: f32[1,2,32], index: 1, kind: input, shape index: {}]
  %s2 = inlined_call_operand.hbm [shape: f32[2,8,64], index: 2, kind: input, shape index: {}]
  %s3 = inlined_call_operand.hbm [shape: f32[168,128], index: 3, kind: input, shape index: {}]
  %s4 = inlined_call_operand.vmem [shape: f32[2,128], index: 4, kind: output, shape index: {}]
  %s5 = sld [smem:[#allocation0]]
  $region38: #{_decoder_step_jit.1} parent=0
    _
  %s7 = ssub.s32 1, %s5
  %s8 = scalar_select 0, %s7, %s5
  $region1: #{_decoder_step_jit.1} parent=0
    #allocation2 [shape = 'u8[1024]{0}', space=smem, size = 0x400, scoped, tag = 'input window, operand 0, single buffered']
    #allocation3 [shape = 's32[1]{0}', space=sflag, size = 0x4, scoped, tag = 'scoped memory for _decoder_step_jit.1']
    #allocation4 [shape = 's32[1]{0}', space=sflag, size = 0x4, scoped, tag = 'scoped memory for _decoder_step_jit.1']
    #allocation5 [shape = 'u8[8192]{0}', space=vmem, size = 0x2000, scoped, tag = 'input window, operand 2, single buffered']
    #allocation6 [shape = 'u8[86016]{0}', space=vmem, size = 0x15000, scoped, tag = 'input window, operand 3, single buffered']
    #allocation7 [shape = 's32[1]{0}', space=sflag, size = 0x4, scoped, tag = 'scoped memory for _decoder_step_jit.1']
    %9 = vsyncpa [#allocation4], 0
    %10 = vsyncpa [#allocation3], 0
    %11 = vsyncpa [#allocation7], 0
    // Predicated region
    $region2: #{_decoder_step_jit.1} parent=1 // pred_check
      _
    $region3: #{_decoder_step_jit.1} parent=1 // pred_check_branch
      %13 = sbr.rel (0) target = $region5
    $region4: #{_decoder_step_jit.1} parent=1 // pred_region
      %s15 = ssub.s32 32, 32
      %16 = vsyncadd [#allocation4], %s15
      %s18 = sshll.u32 %s0, 4
      %s19 = int_to_ptr.vmem [resolvable:$true] %s18
      %21 = dma.vmem_to_smem %s19, 32, [#allocation2], [#allocation4]
    $region5: #{_decoder_step_jit.1} parent=1 // pred_fallthru
      _
    // Predicated region
    $region6: #{_decoder_step_jit.1} parent=1 // pred_check
      _
    $region7: #{_decoder_step_jit.1} parent=1 // pred_check_branch
      %23 = sbr.rel (0) target = $region9
    $region8: #{_decoder_step_jit.1} parent=1 // pred_region
      _
    $region9: #{_decoder_step_jit.1} parent=1 // pred_fallthru
      _
    // Predicated region
    $region10: #{_decoder_step_jit.1} parent=1 // pred_check
      _
    $region11: #{_decoder_step_jit.1} parent=1 // pred_check_branch
      %25 = sbr.rel (0) target = $region13
    $region12: #{_decoder_step_jit.1} parent=1 // pred_region
      %s27 = ssub.s32 256, 256
      %28 = vsyncadd [#allocation3], %s27
      %s29 = sshll.u32 [#allocation5], 4
      %s30 = int_to_ptr.vmem [resolvable:$true] %s29
      %35 = dma.hbm_to_vmem [thread:$0]  %s2, 256, %s30, [#allocation3], 128, 128, 8
    $region13: #{_decoder_step_jit.1} parent=1 // pred_fallthru
      _
    // Predicated region
    $region14: #{_decoder_step_jit.1} parent=1 // pred_check
      _
    $region15: #{_decoder_step_jit.1} parent=1 // pred_check_branch
      %37 = sbr.rel (0) target = $region17
    $region16: #{_decoder_step_jit.1} parent=1 // pred_region
      %s39 = ssub.s32 2688, 2688
      %40 = vsyncadd [#allocation7], %s39
      %s41 = sshll.u32 [#allocation6], 4
      %s42 = int_to_ptr.vmem [resolvable:$true] %s41
      %47 = dma.hbm_to_vmem [thread:$0]  %s3, 2688, %s42, [#allocation7], 128, 128, 8
    $region17: #{_decoder_step_jit.1} parent=1 // pred_fallthru
      _
    // Predicated region
    $region18: #{_decoder_step_jit.1} parent=1 // pred_check
      _
    $region19: #{_decoder_step_jit.1} parent=1 // pred_check_branch
      %49 = sbr.rel (0) target = $region21
    $region20: #{_decoder_step_jit.1} parent=1 // pred_region
      %50 = dma.done [#allocation4], 32
    $region21: #{_decoder_step_jit.1} parent=1 // pred_fallthru
      _
    // Predicated region
    $region22: #{_decoder_step_jit.1} parent=1 // pred_check
      _
    $region23: #{_decoder_step_jit.1} parent=1 // pred_check_branch
      %52 = sbr.rel (0) target = $region25
    $region24: #{_decoder_step_jit.1} parent=1 // pred_region
      %53 = dma.done [#allocation3], 256
    $region25: #{_decoder_step_jit.1} parent=1 // pred_fallthru
      _
    // Predicated region
    $region26: #{_decoder_step_jit.1} parent=1 // pred_check
      _
    $region27: #{_decoder_step_jit.1} parent=1 // pred_check_branch
      %55 = sbr.rel (0) target = $region29
    $region28: #{_decoder_step_jit.1} parent=1 // pred_region
      %56 = dma.done [#allocation7], 2688
    $region29: #{_decoder_step_jit.1} parent=1 // pred_fallthru
      _
    %57 = sfence
    %v58 = vld [vmem:[%s1] sm:$0x3]
    %v59 = vld [vmem:[#allocation5] sm:$0xff]
    %v60 = vld [vmem:[#allocation5 + $0x8] sm:$0xff]
    %v61 = vld [vmem:[#allocation6 + $0x80] sm:$0xff]
    %s62 = sld [smem:[#allocation2]]
    %v63 = vlaneseq
    %v64 = vand.u32 %v63, 127
    %v65 = vstv %s62
    %vm66 = vcmp.eq.s32.totalorder %v64, %v65
    %v67 = vsel %vm66, 1, 0
    %v68 = vcvt.s32.f32 %v67
    %s69 = sld [smem:[#allocation2 + $0x80]]
    %v70 = vstv %s69
    %vm71 = vcmp.eq.s32.totalorder %v64, %v70
    %v72 = vsel %vm71, 1, 0
    %v73 = vcvt.s32.f32 %v72
    %vm74 = vcmask 1040384
    %v75 = vsel %vm74, %v68, %v73
    %v76 = vld [vmem:[#allocation6 + $0x88] sm:$0xff]
    %v77 = vld [vmem:[#allocation6 + $0x90] sm:$0xff]
    %v78 = vld [vmem:[#allocation6 + $0x98] sm:$0xff]
    %v79 = vld [vmem:[#allocation6 + $0xa0] sm:$0xff]
    %vm80 = vcmask 261120
    %v82 = vsel %vm80, %v75, 0
    %84 = vmatprep.subr.mxu0 0.0
    %85 = vmatpush1.msra.mxu0 %v76
    %86 = vmatprep.subr.mxu0 0.0
    %87 = vmatpush1.msra.mxu0 %v77
    %88 = vmatprep.subr.mxu0 0.0
    %89 = vmatpush1.msra.mxu0 %v78
    %90 = vmatprep.subr.mxu0 0.0
    %91 = vmatpush1.msra.mxu0 %v79
    %92 = vmatprep.subr.mxu0 0.0
    %93 = vmatpush1.msra.mxu0 0.0
    %94 = vmatprep.subr.mxu0 0.0
    %95 = vmatpush1.msra.mxu0 0.0
    %96 = vmatprep.subr.mxu0 0.0
    %97 = vmatpush1.msra.mxu0 0.0
    %98 = vmatprep.subr.mxu0 0.0
    %99 = vmatpush1.msra.mxu0 0.0
    %100 = vmatprep.subr.mxu0 0.0
    %101 = vmatpush1.msra.mxu0 0.0
    %102 = vmatprep.subr.mxu0 0.0
    %103 = vmatpush1.msra.mxu0 0.0
    %104 = vmatprep.subr.mxu0 0.0
    %105 = vmatpush1.msra.mxu0 0.0
    %106 = vmatprep.subr.mxu0 0.0
    %107 = vmatpush1.msra.mxu0 0.0
    %108 = vmatprep.subr.mxu0 0.0
    %109 = vmatpush1.msra.mxu0 0.0
    %110 = vmatprep.subr.mxu0 0.0
    %111 = vmatpush1.msra.mxu0 0.0
    %112 = vmatprep.subr.mxu0 0.0
    %113 = vmatpush1.msra.mxu0 0.0
    %114 = vmatprep.subr.mxu0 0.0
    %115 = vmatpush1.msra.mxu0 0.0
    %116 = vmatprep.subr.mxu0 0.0
    %117 = vmatpush1.msra.mxu0 0.0
    %118 = vmatprep.subr.mxu0 0.0
    %119 = vmatpush1.msra.mxu0 0.0
    %120 = vmatprep.subr.mxu0 0.0
    %121 = vmatpush1.msra.mxu0 0.0
    %122 = vmatprep.subr.mxu0 0.0
    %123 = vmatpush1.msra.mxu0 0.0
    %124 = vmatprep.subr.mxu0 0.0
    %125 = vmatpush1.msra.mxu0 0.0
    %126 = vmatprep.subr.mxu0 0.0
    %127 = vmatpush1.msra.mxu0 0.0
    %128 = vmatprep.subr.mxu0 0.0
    %129 = vmatpush1.msra.mxu0 0.0
    %130 = vmatprep.subr.mxu0 0.0
    %131 = vmatpush1.msra.mxu0 0.0
    %132 = vmatprep.subr.mxu0 0.0
    %133 = vmatpush1.msra.mxu0 0.0
    %134 = vmatprep.subr.mxu0 0.0
    %135 = vmatpush1.msra.mxu0 0.0
    %136 = vmatprep.subr.mxu0 0.0
    %137 = vmatpush1.msra.mxu0 0.0
    %138 = vmatprep.subr.mxu0 0.0
    %139 = vmatpush1.msra.mxu0 0.0
    %140 = vmatprep.subr.mxu0 0.0
    %141 = vmatpush1.msra.mxu0 0.0
    %142 = vmatprep.subr.mxu0 0.0
    %143 = vmatpush1.msra.mxu0 0.0
    %144 = vmatprep.subr.mxu0 0.0
    %145 = vmatpush1.msra.mxu0 0.0
    %146 = vmatprep.subr.mxu0 0.0
    %147 = vmatpush1.msra.mxu0 0.0
    %148 = vmatprep.mubr.f32.mxu0 0.0
    %149 = vmatmul.mubr.f32.gmra.mrb[0].mxu0 %v82
    %v150 = vpop.f32.mrb[0].mxu0
    %v151 = vadd.f32 0.0, %v150
    %v152 = vpop.f32.mrb[0].mxu0
    %153 = vdwg.mxu0
    %v154 = vld [vmem:[#allocation6] sm:$0xff]
    %v155 = vld [vmem:[#allocation6 + $0x8] sm:$0xff]
    %v156 = vld [vmem:[#allocation6 + $0x10] sm:$0xff]
    %v157 = vld [vmem:[#allocation6 + $0x18] sm:$0xff]
    %v158 = vlaneseq
    %v159 = vshrl.u32 %v158, 7
    %v160 = vsub.s32 1, %v159
    %v161 = vrot.slane %v61, %v160
    %v163 = vsel %vm80, %v58, 0
    %165 = vmatprep.subr.mxu0 0.0
    %166 = vmatpush1.msra.mxu0 %v154
    %167 = vmatprep.subr.mxu0 0.0
    %168 = vmatpush1.msra.mxu0 %v155
    %169 = vmatprep.subr.mxu0 0.0
    %170 = vmatpush1.msra.mxu0 %v156
    %171 = vmatprep.subr.mxu0 0.0
    %172 = vmatpush1.msra.mxu0 %v157
    %173 = vmatprep.subr.mxu0 0.0
    %174 = vmatpush1.msra.mxu0 0.0
    %175 = vmatprep.subr.mxu0 0.0
    %176 = vmatpush1.msra.mxu0 0.0
    %177 = vmatprep.subr.mxu0 0.0
    %178 = vmatpush1.msra.mxu0 0.0
    %179 = vmatprep.subr.mxu0 0.0
    %180 = vmatpush1.msra.mxu0 0.0
    %181 = vmatprep.subr.mxu0 0.0
    %182 = vmatpush1.msra.mxu0 0.0
    %183 = vmatprep.subr.mxu0 0.0
    %184 = vmatpush1.msra.mxu0 0.0
    %185 = vmatprep.subr.mxu0 0.0
    %186 = vmatpush1.msra.mxu0 0.0
    %187 = vmatprep.subr.mxu0 0.0
    %188 = vmatpush1.msra.mxu0 0.0
    %189 = vmatprep.subr.mxu0 0.0
    %190 = vmatpush1.msra.mxu0 0.0
    %191 = vmatprep.subr.mxu0 0.0
    %192 = vmatpush1.msra.mxu0 0.0
    %193 = vmatprep.subr.mxu0 0.0
    %194 = vmatpush1.msra.mxu0 0.0
    %195 = vmatprep.subr.mxu0 0.0
    %196 = vmatpush1.msra.mxu0 0.0
    %197 = vmatprep.subr.mxu0 0.0
    %198 = vmatpush1.msra.mxu0 0.0
    %199 = vmatprep.subr.mxu0 0.0
    %200 = vmatpush1.msra.mxu0 0.0
    %201 = vmatprep.subr.mxu0 0.0
    %202 = vmatpush1.msra.mxu0 0.0
    %203 = vmatprep.subr.mxu0 0.0
    %204 = vmatpush1.msra.mxu0 0.0
    %205 = vmatprep.subr.mxu0 0.0
    %206 = vmatpush1.msra.mxu0 0.0
    %207 = vmatprep.subr.mxu0 0.0
    %208 = vmatpush1.msra.mxu0 0.0
    %209 = vmatprep.subr.mxu0 0.0
    %210 = vmatpush1.msra.mxu0 0.0
    %211 = vmatprep.subr.mxu0 0.0
    %212 = vmatpush1.msra.mxu0 0.0
    %213 = vmatprep.subr.mxu0 0.0
    %214 = vmatpush1.msra.mxu0 0.0
    %215 = vmatprep.subr.mxu0 0.0
    %216 = vmatpush1.msra.mxu0 0.0
    %217 = vmatprep.subr.mxu0 0.0
    %218 = vmatpush1.msra.mxu0 0.0
    %219 = vmatprep.subr.mxu0 0.0
    %220 = vmatpush1.msra.mxu0 0.0
    %221 = vmatprep.subr.mxu0 0.0
    %222 = vmatpush1.msra.mxu0 0.0
    %223 = vmatprep.subr.mxu0 0.0
    %224 = vmatpush1.msra.mxu0 0.0
    %225 = vmatprep.subr.mxu0 0.0
    %226 = vmatpush1.msra.mxu0 0.0
    %227 = vmatprep.subr.mxu0 0.0
    %228 = vmatpush1.msra.mxu0 0.0
    %229 = vmatprep.mubr.f32.mxu0 0.0
    %230 = vmatmul.mubr.f32.gmra.mrb[0].mxu0 %v163
    %v231 = vpop.f32.mrb[0].mxu0
    %v232 = vadd.f32 %v161, %v231
    %v233 = vpop.f32.mrb[0].mxu0
    %234 = vdwg.mxu0
    %v237 = vunpack.c.l.s4 1966171168
    %v238 = vunpack.c.0.s8 %v237
    %v239 = vlaneseq
    %v240 = vshrl.u32 %v239, 7
    %v241 = vsub.s32 %v238, %v240
    %v242 = vrot.slane %v232, %v241
    %v243 = vcombine.high %v242, %v242
    %v245 = vunpack.c.l.s4 1966171168
    %v246 = vunpack.c.0.s8 %v245
    %v247 = vlaneseq
    %v248 = vshrl.u32 %v247, 7
    %v249 = vsub.s32 %v246, %v248
    %v250 = vrot.slane %v242, %v249
    %v252 = vunpack.c.l.s4 1966171168
    %v253 = vunpack.c.0.s8 %v252
    %v254 = vlaneseq
    %v255 = vshrl.u32 %v254, 7
    %v256 = vsub.s32 %v253, %v255
    %v257 = vrot.slane %v243, %v256
    %v258 = vlaneseq
    %v259 = vshrl.u32 %v258, 7
    %v260 = vsub.s32 0, %v259
    %v261 = vrot.slane %v250, %v260
    %v262 = vlaneseq
    %v263 = vshrl.u32 %v262, 7
    %v264 = vsub.s32 0, %v263
    %v265 = vrot.slane %v257, %v264
    %266 = vrot.lane.b32.xlu0 %v261, 32
    %v267 = vpop.permute.xlu0 %266
    %268 = vrot.lane.b32.xlu0 %v265, 32
    %v269 = vpop.permute.xlu0 %268
    %v272 = vadd.f32 %v59, %v267
    %v273 = vadd.f32 %v60, %v269
    %v274 = vtanh.pop %v272
    %v275 = vtanh.pop %v273
    %v276 = vlaneseq
    %v277 = vshrl.u32 %v276, 7
    %v278 = vsub.s32 0, %v277
    %v279 = vrot.slane %v61, %v278
    %281 = vrot.lane.b32.xlu0 %v279, 32
    %v282 = vpop.permute.xlu0 %281
    %v284 = vmul.f32 %v274, %v282
    %v285 = vmul.f32 %v275, %v282
    %288 = vrot.lane.b32.xlu0 %v284, 96
    %v289 = vpop.permute.xlu0 %288
    %290 = vrot.lane.b32.xlu0 %v285, 96
    %v291 = vpop.permute.xlu0 %290
    %v294 = vsel %vm80, %v289, 0.0
    %295 = vadd.xlane.f32.xlu0 %v294
    %v296 = vpop.xlane.xlu0 %295
    %v297 = vsel %vm80, %v291, 0.0
    %298 = vadd.xlane.f32.xlu0 %v297
    %v299 = vpop.xlane.xlu0 %298
    %v302 = vlaneseq
    %v303 = vshrl.u32 %v302, 7
    %v304 = vsub.s32 %v64, %v303
    %v305 = vrot.slane %v296, %v304
    %v306 = vlaneseq
    %v307 = vshrl.u32 %v306, 7
    %v308 = vsub.s32 %v64, %v307
    %v309 = vrot.slane %v299, %v308
    %vm310 = vcmask 1041409
    %v311 = vsel %vm310, %v309, %v305
    %vm313 = vcmask 58368
    %v314 = vsel %vm313, %v311, -inf
    %315 = vmax.xlane.f32.xlu0 %v314
    %v316 = vpop.xlane.xlu0 %315
    %v318 = vlaneseq
    %v319 = vshrl.u32 %v318, 7
    %v320 = vsub.s32 0, %v319
    %v321 = vrot.slane %v316, %v320
    %v322 = vlaneseq
    %v323 = vshrl.u32 %v322, 7
    %v324 = vsub.s32 1, %v323
    %v325 = vrot.slane %v316, %v324
    %v328 = vsub.f32 %v296, %v321
    %v329 = vsub.f32 %v299, %v325
    %v330 = vmul.f32 %v328, 1.442695
    %v331 = vpow.pop %v330
    %v332 = vmul.f32 %v329, 1.442695
    %v333 = vpow.pop %v332
    %336 = vset.pattern.permute.xlu0 0
    %337 = vperm.xlu0 %336, %v331
    %v338 = vpop.permute.xlu0 %337
    %339 = vset.pattern.permute.xlu0 0
    %340 = vperm.xlu0 %339, %v333
    %v341 = vpop.permute.xlu0 %340
    %v342 = vlaneseq
    %v343 = vshrl.u32 %v342, 7
    %v344 = vsub.s32 %v64, %v343
    %v345 = vrot.slane %v338, %v344
    %v346 = vlaneseq
    %v347 = vshrl.u32 %v346, 7
    %v348 = vsub.s32 %v64, %v347
    %v349 = vrot.slane %v341, %v348
    %v350 = vsel %vm310, %v349, %v345
    %v352 = vsel %vm313, %v350, 0.0
    %353 = vadd.xlane.f32.xlu0 %v352
    %v354 = vpop.xlane.xlu0 %353
    %v355 = vrcp.pop %v354
    %v357 = vlaneseq
    %v358 = vshrl.u32 %v357, 7
    %v359 = vsub.s32 0, %v358
    %v360 = vrot.slane %v355, %v359
    %v361 = vlaneseq
    %v362 = vshrl.u32 %v361, 7
    %v363 = vsub.s32 1, %v362
    %v364 = vrot.slane %v355, %v363
    %v367 = vmul.f32 %v331, %v360
    %v368 = vmul.f32 %v333, %v364
    %370 = vset.pattern.permute.xlu0 0
    %371 = vperm.xlu0 %370, %v367
    %v372 = vpop.permute.xlu0 %371
    %375 = vset.pattern.permute.xlu0 0
    %376 = vperm.xlu0 %375, %v368
    %v377 = vpop.permute.xlu0 %376
    %v379 = vmul.f32 %v372, %v59
    %v380 = vmul.f32 %v377, %v60
    %v381 = vsel %vm80, %v379, 0.0
    %v382 = vrot.slane %v381, 4
    %v383 = vadd.f32 %v381, %v382
    %v384 = vrot.slane %v383, 2
    %v385 = vadd.f32 %v383, %v384
    %v386 = vrot.slane %v385, 1
    %v387 = vadd.f32 %v385, %v386
    %v388 = vsel %vm80, %v380, 0.0
    %v389 = vrot.slane %v388, 4
    %v390 = vadd.f32 %v388, %v389
    %v391 = vrot.slane %v390, 2
    %v392 = vadd.f32 %v390, %v391
    %v393 = vrot.slane %v392, 1
    %v394 = vadd.f32 %v392, %v393
    %v397 = vsel %vm310, %v394, %v387
    %400 = vrot.lane.b32.xlu0 %v151, 32
    %v401 = vpop.permute.xlu0 %400
    %v403 = vsel %vm80, %v397, %v401
    %v404 = vld [vmem:[#allocation6 + $0x20] sm:$0xff]
    %v405 = vld [vmem:[#allocation6 + $0x28] sm:$0xff]
    %v406 = vld [vmem:[#allocation6 + $0x30] sm:$0xff]
    %v407 = vld [vmem:[#allocation6 + $0x38] sm:$0xff]
    %v408 = vld [vmem:[#allocation6 + $0x40] sm:$0xff]
    %v409 = vld [vmem:[#allocation6 + $0x48] sm:$0xff]
    %v410 = vlaneseq
    %v411 = vshrl.u32 %v410, 7
    %v412 = vsub.s32 2, %v411
    %v413 = vrot.slane %v61, %v412
    %vm414 = vcmask 392192
    %v416 = vsel %vm414, %v403, 0
    %418 = vmatprep.subr.mxu0 0.0
    %419 = vmatpush1.msra.mxu0 %v404
    %420 = vmatprep.subr.mxu0 0.0
    %421 = vmatpush1.msra.mxu0 %v405
    %422 = vmatprep.subr.mxu0 0.0
    %423 = vmatpush1.msra.mxu0 %v406
    %424 = vmatprep.subr.mxu0 0.0
    %425 = vmatpush1.msra.mxu0 %v407
    %426 = vmatprep.subr.mxu0 0.0
    %427 = vmatpush1.msra.mxu0 %v408
    %428 = vmatprep.subr.mxu0 0.0
    %429 = vmatpush1.msra.mxu0 %v409
    %430 = vmatprep.subr.mxu0 0.0
    %431 = vmatpush1.msra.mxu0 0.0
    %432 = vmatprep.subr.mxu0 0.0
    %433 = vmatpush1.msra.mxu0 0.0
    %434 = vmatprep.subr.mxu0 0.0
    %435 = vmatpush1.msra.mxu0 0.0
    %436 = vmatprep.subr.mxu0 0.0
    %437 = vmatpush1.msra.mxu0 0.0
    %438 = vmatprep.subr.mxu0 0.0
    %439 = vmatpush1.msra.mxu0 0.0
    %440 = vmatprep.subr.mxu0 0.0
    %441 = vmatpush1.msra.mxu0 0.0
    %442 = vmatprep.subr.mxu0 0.0
    %443 = vmatpush1.msra.mxu0 0.0
    %444 = vmatprep.subr.mxu0 0.0
    %445 = vmatpush1.msra.mxu0 0.0
    %446 = vmatprep.subr.mxu0 0.0
    %447 = vmatpush1.msra.mxu0 0.0
    %448 = vmatprep.subr.mxu0 0.0
    %449 = vmatpush1.msra.mxu0 0.0
    %450 = vmatprep.subr.mxu0 0.0
    %451 = vmatpush1.msra.mxu0 0.0
    %452 = vmatprep.subr.mxu0 0.0
    %453 = vmatpush1.msra.mxu0 0.0
    %454 = vmatprep.subr.mxu0 0.0
    %455 = vmatpush1.msra.mxu0 0.0
    %456 = vmatprep.subr.mxu0 0.0
    %457 = vmatpush1.msra.mxu0 0.0
    %458 = vmatprep.subr.mxu0 0.0
    %459 = vmatpush1.msra.mxu0 0.0
    %460 = vmatprep.subr.mxu0 0.0
    %461 = vmatpush1.msra.mxu0 0.0
    %462 = vmatprep.subr.mxu0 0.0
    %463 = vmatpush1.msra.mxu0 0.0
    %464 = vmatprep.subr.mxu0 0.0
    %465 = vmatpush1.msra.mxu0 0.0
    %466 = vmatprep.subr.mxu0 0.0
    %467 = vmatpush1.msra.mxu0 0.0
    %468 = vmatprep.subr.mxu0 0.0
    %469 = vmatpush1.msra.mxu0 0.0
    %470 = vmatprep.subr.mxu0 0.0
    %471 = vmatpush1.msra.mxu0 0.0
    %472 = vmatprep.subr.mxu0 0.0
    %473 = vmatpush1.msra.mxu0 0.0
    %474 = vmatprep.subr.mxu0 0.0
    %475 = vmatpush1.msra.mxu0 0.0
    %476 = vmatprep.subr.mxu0 0.0
    %477 = vmatpush1.msra.mxu0 0.0
    %478 = vmatprep.subr.mxu0 0.0
    %479 = vmatpush1.msra.mxu0 0.0
    %480 = vmatprep.subr.mxu0 0.0
    %481 = vmatpush1.msra.mxu0 0.0
    %482 = vmatprep.mubr.f32.mxu0 0.0
    %483 = vmatmul.mubr.f32.gmra.mrb[0].mxu0 %v416
    %v484 = vpop.f32.mrb[0].mxu0
    %v485 = vadd.f32 %v413, %v484
    %v486 = vpop.f32.mrb[0].mxu0
    %487 = vdwg.mxu0
    %488 = vrot.lane.b32.xlu0 %v232, 96
    %v489 = vpop.permute.xlu0 %488
    %v491 = vadd.f32 %v485, %v489
    %v492 = vxor.u32 %v491, 2147483648
    %v493 = vmul.f32 %v492, 1.442695
    %v494 = vpow.pop %v493
    %v495 = vadd.f32 %v494, 1.0
    %v496 = vrcp.pop %v495
    %v497 = vmul.f32 1.0, %v496
    %498 = vrot.lane.b32.xlu0 %v232, 32
    %v499 = vpop.permute.xlu0 %498
    %v501 = vmul.f32 %v497, %v499
    %503 = vrot.lane.b32.xlu0 %v501, 64
    %v504 = vpop.permute.xlu0 %503
    %v506 = vadd.f32 %v485, %v504
    %v507 = vtanh.pop %v506
    %v508 = vsub.f32 1.0, %v497
    %510 = vrot.lane.b32.xlu0 %v507, 96
    %v511 = vpop.permute.xlu0 %510
    %v513 = vmul.f32 %v508, %v511
    %514 = vrot.lane.b32.xlu0 %v58, 32
    %v515 = vpop.permute.xlu0 %514
    %v517 = vmul.f32 %v497, %v515
    %v518 = vadd.f32 %v513, %v517
    %v519 = vld [vmem:[#allocation6 + $0x50] sm:$0xff]
    %v520 = vld [vmem:[#allocation6 + $0x58] sm:$0xff]
    %v521 = vld [vmem:[#allocation6 + $0x60] sm:$0xff]
    %v522 = vld [vmem:[#allocation6 + $0x68] sm:$0xff]
    %524 = vrot.lane.b32.xlu0 %v518, 96
    %v525 = vpop.permute.xlu0 %524
    %v526 = vsel %vm80, %v525, 0
    %528 = vmatprep.subr.mxu0 0.0
    %529 = vmatpush1.msra.mxu0 %v519
    %530 = vmatprep.subr.mxu0 0.0
    %531 = vmatpush1.msra.mxu0 %v520
    %532 = vmatprep.subr.mxu0 0.0
    %533 = vmatpush1.msra.mxu0 %v521
    %534 = vmatprep.subr.mxu0 0.0
    %535 = vmatpush1.msra.mxu0 %v522
    %536 = vmatprep.subr.mxu0 0.0
    %537 = vmatpush1.msra.mxu0 0.0
    %538 = vmatprep.subr.mxu0 0.0
    %539 = vmatpush1.msra.mxu0 0.0
    %540 = vmatprep.subr.mxu0 0.0
    %541 = vmatpush1.msra.mxu0 0.0
    %542 = vmatprep.subr.mxu0 0.0
    %543 = vmatpush1.msra.mxu0 0.0
    %544 = vmatprep.subr.mxu0 0.0
    %545 = vmatpush1.msra.mxu0 0.0
    %546 = vmatprep.subr.mxu0 0.0
    %547 = vmatpush1.msra.mxu0 0.0
    %548 = vmatprep.subr.mxu0 0.0
    %549 = vmatpush1.msra.mxu0 0.0
    %550 = vmatprep.subr.mxu0 0.0
    %551 = vmatpush1.msra.mxu0 0.0
    %552 = vmatprep.subr.mxu0 0.0
    %553 = vmatpush1.msra.mxu0 0.0
    %554 = vmatprep.subr.mxu0 0.0
    %555 = vmatpush1.msra.mxu0 0.0
    %556 = vmatprep.subr.mxu0 0.0
    %557 = vmatpush1.msra.mxu0 0.0
    %558 = vmatprep.subr.mxu0 0.0
    %559 = vmatpush1.msra.mxu0 0.0
    %560 = vmatprep.subr.mxu0 0.0
    %561 = vmatpush1.msra.mxu0 0.0
    %562 = vmatprep.subr.mxu0 0.0
    %563 = vmatpush1.msra.mxu0 0.0
    %564 = vmatprep.subr.mxu0 0.0
    %565 = vmatpush1.msra.mxu0 0.0
    %566 = vmatprep.subr.mxu0 0.0
    %567 = vmatpush1.msra.mxu0 0.0
    %568 = vmatprep.subr.mxu0 0.0
    %569 = vmatpush1.msra.mxu0 0.0
    %570 = vmatprep.subr.mxu0 0.0
    %571 = vmatpush1.msra.mxu0 0.0
    %572 = vmatprep.subr.mxu0 0.0
    %573 = vmatpush1.msra.mxu0 0.0
    %574 = vmatprep.subr.mxu0 0.0
    %575 = vmatpush1.msra.mxu0 0.0
    %576 = vmatprep.subr.mxu0 0.0
    %577 = vmatpush1.msra.mxu0 0.0
    %578 = vmatprep.subr.mxu0 0.0
    %579 = vmatpush1.msra.mxu0 0.0
    %580 = vmatprep.subr.mxu0 0.0
    %581 = vmatpush1.msra.mxu0 0.0
    %582 = vmatprep.subr.mxu0 0.0
    %583 = vmatpush1.msra.mxu0 0.0
    %584 = vmatprep.subr.mxu0 0.0
    %585 = vmatpush1.msra.mxu0 0.0
    %586 = vmatprep.subr.mxu0 0.0
    %587 = vmatpush1.msra.mxu0 0.0
    %588 = vmatprep.subr.mxu0 0.0
    %589 = vmatpush1.msra.mxu0 0.0
    %590 = vmatprep.subr.mxu0 0.0
    %591 = vmatpush1.msra.mxu0 0.0
    %592 = vmatprep.mubr.f32.mxu0 0.0
    %593 = vmatmul.mubr.f32.gmra.mrb[0].mxu0 %v526
    %v594 = vpop.f32.mrb[0].mxu0
    %v595 = vadd.f32 0.0, %v594
    %v596 = vpop.f32.mrb[0].mxu0
    %597 = vdwg.mxu0
    %v598 = vlaneseq
    %v599 = vshrl.u32 %v598, 7
    %v600 = vsub.s32 3, %v599
    %v601 = vrot.slane %v61, %v600
    %v602 = vadd.f32 %v595, %v601
    %vm603 = vcmp.gt.f32.partialorder %v602, 0.0
    %v604 = vmul.f32 %v602, 0.01
    %v605 = vsel %vm603, %v602, %v604
    %v606 = vld [vmem:[#allocation6 + $0x70] sm:$0xff]
    %v607 = vld [vmem:[#allocation6 + $0x78] sm:$0xff]
    %vm608 = vcmask 130048
    %v610 = vsel %vm608, %v605, 0
    %612 = vmatprep.subr.mxu0 0.0
    %613 = vmatpush1.msra.mxu0 %v606
    %614 = vmatprep.subr.mxu0 0.0
    %615 = vmatpush1.msra.mxu0 %v607
    %616 = vmatprep.subr.mxu0 0.0
    %617 = vmatpush1.msra.mxu0 0.0
    %618 = vmatprep.subr.mxu0 0.0
    %619 = vmatpush1.msra.mxu0 0.0
    %620 = vmatprep.subr.mxu0 0.0
    %621 = vmatpush1.msra.mxu0 0.0
    %622 = vmatprep.subr.mxu0 0.0
    %623 = vmatpush1.msra.mxu0 0.0
    %624 = vmatprep.subr.mxu0 0.0
    %625 = vmatpush1.msra.mxu0 0.0
    %626 = vmatprep.subr.mxu0 0.0
    %627 = vmatpush1.msra.mxu0 0.0
    %628 = vmatprep.subr.mxu0 0.0
    %629 = vmatpush1.msra.mxu0 0.0
    %630 = vmatprep.subr.mxu0 0.0
    %631 = vmatpush1.msra.mxu0 0.0
    %632 = vmatprep.subr.mxu0 0.0
    %633 = vmatpush1.msra.mxu0 0.0
    %634 = vmatprep.subr.mxu0 0.0
    %635 = vmatpush1.msra.mxu0 0.0
    %636 = vmatprep.subr.mxu0 0.0
    %637 = vmatpush1.msra.mxu0 0.0
    %638 = vmatprep.subr.mxu0 0.0
    %639 = vmatpush1.msra.mxu0 0.0
    %640 = vmatprep.subr.mxu0 0.0
    %641 = vmatpush1.msra.mxu0 0.0
    %642 = vmatprep.subr.mxu0 0.0
    %643 = vmatpush1.msra.mxu0 0.0
    %644 = vmatprep.subr.mxu0 0.0
    %645 = vmatpush1.msra.mxu0 0.0
    %646 = vmatprep.subr.mxu0 0.0
    %647 = vmatpush1.msra.mxu0 0.0
    %648 = vmatprep.subr.mxu0 0.0
    %649 = vmatpush1.msra.mxu0 0.0
    %650 = vmatprep.subr.mxu0 0.0
    %651 = vmatpush1.msra.mxu0 0.0
    %652 = vmatprep.subr.mxu0 0.0
    %653 = vmatpush1.msra.mxu0 0.0
    %654 = vmatprep.subr.mxu0 0.0
    %655 = vmatpush1.msra.mxu0 0.0
    %656 = vmatprep.subr.mxu0 0.0
    %657 = vmatpush1.msra.mxu0 0.0
    %658 = vmatprep.subr.mxu0 0.0
    %659 = vmatpush1.msra.mxu0 0.0
    %660 = vmatprep.subr.mxu0 0.0
    %661 = vmatpush1.msra.mxu0 0.0
    %662 = vmatprep.subr.mxu0 0.0
    %663 = vmatpush1.msra.mxu0 0.0
    %664 = vmatprep.subr.mxu0 0.0
    %665 = vmatpush1.msra.mxu0 0.0
    %666 = vmatprep.subr.mxu0 0.0
    %667 = vmatpush1.msra.mxu0 0.0
    %668 = vmatprep.subr.mxu0 0.0
    %669 = vmatpush1.msra.mxu0 0.0
    %670 = vmatprep.subr.mxu0 0.0
    %671 = vmatpush1.msra.mxu0 0.0
    %672 = vmatprep.subr.mxu0 0.0
    %673 = vmatpush1.msra.mxu0 0.0
    %674 = vmatprep.subr.mxu0 0.0
    %675 = vmatpush1.msra.mxu0 0.0
    %676 = vmatprep.mubr.f32.mxu0 0.0
    %677 = vmatmul.mubr.f32.gmra.mrb[0].mxu0 %v610
    %v678 = vpop.f32.mrb[0].mxu0
    %v679 = vadd.f32 0.0, %v678
    %v680 = vpop.f32.mrb[0].mxu0
    %681 = vdwg.mxu0
    %v682 = vlaneseq
    %v683 = vshrl.u32 %v682, 7
    %v684 = vsub.s32 4, %v683
    %v685 = vrot.slane %v61, %v684
    %v686 = vadd.f32 %v679, %v685
    %v687 = vadd.s32 %v64, 4294967232
    %v688 = vlaneseq
    %v689 = vshrl.u32 %v688, 7
    %v690 = vsub.s32 %v687, %v689
    %v691 = vrot.slane %v372, %v690
    %v692 = vlaneseq
    %v693 = vshrl.u32 %v692, 7
    %v694 = vsub.s32 %v687, %v693
    %v695 = vrot.slane %v377, %v694
    %v696 = vsel %vm310, %v695, %v691
    %v698 = vsel %vm80, %v686, %v518
    %vm699 = vcmask 523264
    %v700 = vsel %vm699, %v698, %v696
    %vm701 = vcmask 588800
    %v702 = vsel %vm701, %v700, 0.0
    %703 = vst [vmem:[%s4] sm:$0x3] %v702
    // Predicated region
    $region30: #{_decoder_step_jit.1} parent=1 // pred_check
      _
    $region31: #{_decoder_step_jit.1} parent=1 // pred_check_branch
      %705 = sbr.rel (0) target = $region33
    $region32: #{_decoder_step_jit.1} parent=1 // pred_region
      _
    $region33: #{_decoder_step_jit.1} parent=1 // pred_fallthru
      _
    // Predicated region
    $region34: #{_decoder_step_jit.1} parent=1 // pred_check
      _
    $region35: #{_decoder_step_jit.1} parent=1 // pred_check_branch
      %707 = sbr.rel (0) target = $region37
    $region36: #{_decoder_step_jit.1} parent=1 // pred_region
      _
    $region37: #{_decoder_step_jit.1} parent=1 // pred_fallthru
      _
    %708 = vsyncpa [#allocation3], 1
    %709 = vsyncpa [#allocation7], 1
    %710 = vsyncpa [#allocation4], 1

</llo_original>
